<compile_context>
chip_gen: v7x
topology: tpu7x:2x2x1
jax: 0.10.0
libtpu: 0.0.40
codegen_flags: <defaults>
</compile_context>

<pallas_src>
import jax
import jax.numpy as jnp
from jax import lax
from jax.experimental import pallas as pl
from jax.experimental.pallas import tpu as pltpu


def _round_up(x, m):
    return ((x + m - 1) // m) * m


def _vmem_capacity_bytes():
    try:
        cap = getattr(pltpu.get_tpu_info(), "vmem_capacity_bytes", None)
        if cap:
            return int(cap)
    except Exception:
        pass
    return 64 * 1024 * 1024  # conservative default (v7x per-TensorCore VMEM)


# ---------------------------------------------------------------------------
# Fast path: embedding table resident in VMEM, gather fused into the max-pool.
# ---------------------------------------------------------------------------
def _make_resident_kernel(bt, seq_len, hyp_off, emb_dim, unroll):
    def kernel(ids_ref,      # SMEM scalar prefetch, [2 * Bpad * L] int32
               table_ref,    # VMEM                  [V, D]
               w_ref,        # VMEM                  [2, D] f32
               b_ref,        # SMEM                  [1, 1] f32
               out_ref,      # VMEM                  [1, 1, bt] f32
               part_ref):    # VMEM scratch          [bt, D] f32
        row0 = pl.program_id(0) * bt
        # Hoisted once per tile (no per-row broadcast_in_dim inside the loop).
        w_prem = w_ref[0:1, :].astype(jnp.float32)
        w_hyp = w_ref[1:2, :].astype(jnp.float32)

        @pl.loop(0, bt)
        def _row(r):
            base = (row0 + r) * seq_len

            def tok_body(t, carry):
                p_max, h_max = carry
                p_tok = ids_ref[base + t]
                h_tok = ids_ref[hyp_off + base + t]
                p_row = table_ref[pl.ds(p_tok, 1), :].astype(jnp.float32)
                h_row = table_ref[pl.ds(h_tok, 1), :].astype(jnp.float32)
                return jnp.maximum(p_max, p_row), jnp.maximum(h_max, h_row)

            neg = jnp.full((1, emb_dim), -jnp.inf, dtype=jnp.float32)
            p_max, h_max = lax.fori_loop(0, seq_len, tok_body, (neg, neg),
                                         unroll=unroll)
            # Fuse the Linear's per-feature weighting while the row is hot.
            part_ref[pl.ds(r, 1), :] = p_max * w_prem + h_max * w_hyp

        # N=1 Linear on the VPU: lane reduce + bias + sigmoid, one lane-dense store.
        logits = jnp.sum(part_ref[...], axis=-1) + b_ref[0, 0]          # [bt]
        out_ref[...] = jax.nn.sigmoid(logits).reshape(1, 1, bt)

    return kernel


# ---------------------------------------------------------------------------
# Fallback (large vocab): table stays in HBM; chunked double-buffered DMA
# gather with per-slot semaphores, max-pool fused as chunks land.
# ---------------------------------------------------------------------------
def _make_dma_kernel(bt, seq_len, hyp_off, emb_dim, chunk):
    n_cpr = pl.cdiv(seq_len, chunk)      # chunks per (row, side)
    per_side = bt * n_cpr
    n_chunks = 2 * per_side

    def kernel(ids_ref,      # SMEM scalar prefetch, [2 * Bpad * L] int32
               table_hbm,    # HBM (pl.ANY)          [V, D]
               w_ref,        # VMEM                  [2, D] f32
               b_ref,        # SMEM                  [1, 1] f32
               out_ref,      # VMEM                  [1, 1, bt] f32
               stage_ref,    # VMEM scratch          [2, chunk, D]
               sem_ref,      # DMA semaphores        [2]
               part_ref):    # VMEM scratch          [bt, D] f32
        row0 = pl.program_id(0) * bt

        def decompose(j):                # one div/mod per *chunk*, not per DMA
            side = j // per_side
            rem = j - side * per_side
            r = rem // n_cpr
            c = rem - r * n_cpr
            return side, r, c

        def token_of(side, r, c, t):
            # Clamp ragged tail tokens to the row end; duplicates are harmless
            # under max.  Ids were already clipped to [0, V-1] in the wrapper.
            off = jnp.minimum(c * chunk + t, seq_len - 1)
            return ids_ref[side * hyp_off + (row0 + r) * seq_len + off]

        def descriptors(j, slot):
            side, r, c = decompose(j)
            return [pltpu.make_async_copy(
                        table_hbm.at[pl.ds(token_of(side, r, c, t), 1)],
                        stage_ref.at[slot, pl.ds(t, 1)],
                        sem_ref.at[slot])
                    for t in range(chunk)]       # static unroll

        def issue(j, slot):
            for cp in descriptors(j, slot):
                cp.start()

        def drain(j, slot):
            for cp in descriptors(j, slot):      # wait on the actual descriptors
                cp.wait()

        issue(0, 0)                              # prime slot 0
        part_ref[...] = jnp.zeros_like(part_ref)

        def chunk_body(j, acc):
            slot = lax.rem(j, 2)

            @pl.when(j + 1 < n_chunks)           # prefetch next chunk, other slot
            def _():
                issue(j + 1, 1 - slot)

            drain(j, slot)
            side, r, c = decompose(j)
            c_max = jnp.max(stage_ref[slot].astype(jnp.float32), axis=0,
                            keepdims=True)       # [1, D]
            acc = jnp.where(c == 0, c_max, jnp.maximum(acc, c_max))

            @pl.when(c == n_cpr - 1)             # row done: fold into Linear partials
            def _():
                part_ref[pl.ds(r, 1), :] = (
                    part_ref[pl.ds(r, 1), :]
                    + acc * w_ref[pl.ds(side, 1), :].astype(jnp.float32))
            return acc

        lax.fori_loop(0, n_chunks, chunk_body,
                      jnp.full((1, emb_dim), -jnp.inf, dtype=jnp.float32))

        logits = jnp.sum(part_ref[...], axis=-1) + b_ref[0, 0]
        out_ref[...] = jax.nn.sigmoid(logits).reshape(1, 1, bt)

    return kernel


# ---------------------------------------------------------------------------
# Wrapper
# ---------------------------------------------------------------------------
def pooled_logistic_regression(premise, hypothesis, emb_table, weight, bias,
                               *, batch_tile=256, token_chunk=16):
    """premise/hypothesis: [B, L] int ids; emb_table: [V, D]; weight: [1, 2D]
    (PyTorch Linear layout); bias: [1].  Returns [B] f32 probabilities."""
    B, L = premise.shape
    V, D = emb_table.shape

    # Batch tiling: once B is large enough, use >=2 tiles so both v7x
    # TensorCores get work; keep tiles sublane-aligned.
    if B >= 16:
        bt = min(batch_tile, _round_up(pl.cdiv(B, 2), 8))
    else:
        bt = B
    n_bt = pl.cdiv(B, bt)
    b_pad = n_bt * bt

    def _prep_ids(x):
        x = jnp.clip(x.astype(jnp.int32), 0, V - 1)      # nn.Embedding would raise
        if b_pad != B:
            x = jnp.concatenate([x, jnp.zeros((b_pad - B, L), jnp.int32)], axis=0)
        return x.reshape(-1)

    # Single flattened 1-D id array -> no 2-D SMEM row-padding blow-up.
    ids_flat = jnp.concatenate([_prep_ids(premise), _prep_ids(hypothesis)])
    # [1, 2D] -> [2, D]: row 0 weights the premise pool, row 1 the hypothesis pool.
    w2 = weight.reshape(2, D).astype(jnp.float32)
    b2 = bias.reshape(1, 1).astype(jnp.float32)

    # Generation-aware VMEM budget (v5e/v6e ~128 MiB, v7x ~64 MiB per core).
    vmem_budget = (_vmem_capacity_bytes() * 3) // 4
    table_bytes = V * D * emb_table.dtype.itemsize
    resident_bytes = (2 * table_bytes          # table block (pipeline double-buffer)
                      + bt * D * 4             # partial-product scratch
                      + 4 * D * 4 + 8 * bt     # weights + output blocks
                      + (1 << 20))             # slack
    use_resident = resident_bytes <= vmem_budget

    hyp_off = b_pad * L
    common_specs = [
        pl.BlockSpec((2, D), lambda i, *_: (0, 0)),                     # weights, VMEM-resident
        pl.BlockSpec((1, 1), lambda i, *_: (0, 0),
                     memory_space=pltpu.MemorySpace.SMEM),              # bias scalar
    ]
    out_spec = pl.BlockSpec((1, 1, bt), lambda i, *_: (i, 0, 0))        # lane-dense output row

    if use_resident:
        kernel = _make_resident_kernel(bt, L, hyp_off, D,
                                       unroll=True if L <= 32 else 8)
        in_specs = [pl.BlockSpec((V, D), lambda i, *_: (0, 0))] + common_specs
        scratch = [pltpu.VMEM((bt, D), jnp.float32)]
    else:
        chunk = max(1, min(token_chunk, L))
        kernel = _make_dma_kernel(bt, L, hyp_off, D, chunk)
        in_specs = [pl.BlockSpec(memory_space=pl.ANY)] + common_specs   # table stays in HBM
        scratch = [pltpu.VMEM((2, chunk, D), emb_table.dtype),          # double-buffered staging
                   pltpu.SemaphoreType.DMA((2,)),                       # one semaphore per slot
                   pltpu.VMEM((bt, D), jnp.float32)]

    grid_spec = pltpu.PrefetchScalarGridSpec(
        num_scalar_prefetch=1,           # flattened int32 ids -> SMEM
        grid=(n_bt,),
        in_specs=in_specs,
        out_specs=out_spec,
        scratch_shapes=scratch,
    )

    out = pl.pallas_call(
        kernel,
        out_shape=jax.ShapeDtypeStruct((n_bt, 1, bt), jnp.float32),
        grid_spec=grid_spec,
        compiler_params=pltpu.CompilerParams(
            dimension_semantics=("parallel",),
            vmem_limit_bytes=int(vmem_budget),
        ),
    )(ids_flat, emb_table, w2, b2)
    return out.reshape(-1)[:B]


def _reference(premise, hypothesis, emb_table, weight, bias):
    """Pure-JAX reference of the PyTorch forward."""
    p_pool = jnp.max(emb_table[premise], axis=1)
    h_pool = jnp.max(emb_table[hypothesis], axis=1)
    cat = jnp.concatenate([p_pool, h_pool], axis=1)
    pred = cat @ weight.T + bias
    return jax.nn.sigmoid(pred).reshape(-1)


if __name__ == "__main__":
    B, L, V, D = 2, 8, 32, 32

    key = jax.random.PRNGKey(0)
    k_tab, k_w, k_b, k_p, k_h = jax.random.split(key, 5)

    emb_table = jax.random.normal(k_tab, (V, D), dtype=jnp.float32)
    weight = jax.random.normal(k_w, (1, 2 * D), dtype=jnp.float32) * 0.1
    bias = jax.random.normal(k_b, (1,), dtype=jnp.float32) * 0.1

    premise = jax.random.randint(k_p, (B, L), 0, V, dtype=jnp.int32)
    hypothesis = jax.random.randint(k_h, (B, L), 0, V, dtype=jnp.int32)

    prob = pooled_logistic_regression(premise, hypothesis, emb_table, weight, bias)
    prob = jax.block_until_ready(prob)

    ref = _reference(premise, hypothesis, emb_table, weight, bias)
    assert prob.shape == (B,)
    assert jnp.allclose(prob, ref, atol=1e-5, rtol=1e-5), (prob, ref)

    print("KERNEL_OK")
</pallas_src>

<mosaic_0001>
module attributes {stable_mosaic.version = 11 : i64} {
  func.func @kernel(%arg0: i32, %arg1: memref<32xi32, #tpu.memory_space<smem>>, %arg2: memref<32x32xf32, #tpu.memory_space<vmem>>, %arg3: memref<2x32xf32, #tpu.memory_space<vmem>>, %arg4: memref<1x1xf32, #tpu.memory_space<smem>>, %arg5: memref<1x1x2xf32, #tpu.memory_space<vmem>>, %arg6: memref<2x32xf32, #tpu.memory_space<vmem>>) attributes {dimension_semantics = [#tpu.dimension_semantics<parallel>], iteration_bounds = array<i64: 1>, scalar_prefetch = 1 : i64, scratch_operands = 1 : i64, tpu.core_type = #tpu.core_type<tc>, window_params = [{pipeline_mode = #tpu.pipeline_mode<synchronous>, transform_indices = @transform_0, window_bounds = array<i64: 32, 32>}, {pipeline_mode = #tpu.pipeline_mode<synchronous>, transform_indices = @transform_1, window_bounds = array<i64: 2, 32>}, {transform_indices = @transform_2, window_bounds = array<i64: 1, 1>}, {transform_indices = @transform_3, window_bounds = array<i64: 1, 1, 2>}]} {
    %c2_i32 = arith.constant 2 : i32
    %0 = arith.muli %arg0, %c2_i32 : i32
    %c0 = arith.constant 0 : index
    %c0_0 = arith.constant 0 : index
    %1 = vector.load %arg3[%c0, %c0_0] : memref<2x32xf32, #tpu.memory_space<vmem>>, vector<1x32xf32>
    %c1 = arith.constant 1 : index
    %c0_1 = arith.constant 0 : index
    %2 = vector.load %arg3[%c1, %c0_1] : memref<2x32xf32, #tpu.memory_space<vmem>>, vector<1x32xf32>
    %c0_i32 = arith.constant 0 : i32
    %c2_i32_2 = arith.constant 2 : i32
    %3 = arith.addi %c0_i32, %c2_i32_2 : i32
    %c1_i32 = arith.constant 1 : i32
    scf.for %arg7 = %c0_i32 to %3 step %c1_i32  : i32 {
      %c1_i32_12 = arith.constant 1 : i32
      %16 = arith.muli %arg7, %c1_i32_12 : i32
      %c0_i32_13 = arith.constant 0 : i32
      %17 = arith.addi %c0_i32_13, %16 : i32
      %18 = arith.addi %0, %17 : i32
      %c8_i32 = arith.constant 8 : i32
      %19 = arith.muli %18, %c8_i32 : i32
      %cst_14 = arith.constant 0xFF800000 : f32
      %20 = vector.broadcast %cst_14 : f32 to vector<1x32xf32>
      %c0_i32_15 = arith.constant 0 : i32
      %21 = arith.addi %19, %c0_i32_15 : i32
      %22 = arith.index_cast %21 : i32 to index
      %23 = memref.load %arg1[%22] : memref<32xi32, #tpu.memory_space<smem>>
      %c16_i32 = arith.constant 16 : i32
      %24 = arith.addi %c16_i32, %19 : i32
      %25 = arith.addi %24, %c0_i32_15 : i32
      %26 = arith.index_cast %25 : i32 to index
      %27 = memref.load %arg1[%26] : memref<32xi32, #tpu.memory_space<smem>>
      %28 = arith.index_cast %23 : i32 to index
      %c0_16 = arith.constant 0 : index
      %29 = vector.load %arg2[%28, %c0_16] : memref<32x32xf32, #tpu.memory_space<vmem>>, vector<1x32xf32>
      %30 = arith.index_cast %27 : i32 to index
      %c0_17 = arith.constant 0 : index
      %31 = vector.load %arg2[%30, %c0_17] : memref<32x32xf32, #tpu.memory_space<vmem>>, vector<1x32xf32>
      %32 = arith.maximumf %20, %29 : vector<1x32xf32>
      %33 = arith.maximumf %20, %31 : vector<1x32xf32>
      %c1_i32_18 = arith.constant 1 : i32
      %34 = arith.addi %19, %c1_i32_18 : i32
      %35 = arith.index_cast %34 : i32 to index
      %36 = memref.load %arg1[%35] : memref<32xi32, #tpu.memory_space<smem>>
      %c16_i32_19 = arith.constant 16 : i32
      %37 = arith.addi %c16_i32_19, %19 : i32
      %38 = arith.addi %37, %c1_i32_18 : i32
      %39 = arith.index_cast %38 : i32 to index
      %40 = memref.load %arg1[%39] : memref<32xi32, #tpu.memory_space<smem>>
      %41 = arith.index_cast %36 : i32 to index
      %c0_20 = arith.constant 0 : index
      %42 = vector.load %arg2[%41, %c0_20] : memref<32x32xf32, #tpu.memory_space<vmem>>, vector<1x32xf32>
      %43 = arith.index_cast %40 : i32 to index
      %c0_21 = arith.constant 0 : index
      %44 = vector.load %arg2[%43, %c0_21] : memref<32x32xf32, #tpu.memory_space<vmem>>, vector<1x32xf32>
      %45 = arith.maximumf %32, %42 : vector<1x32xf32>
      %46 = arith.maximumf %33, %44 : vector<1x32xf32>
      %c2_i32_22 = arith.constant 2 : i32
      %47 = arith.addi %19, %c2_i32_22 : i32
      %48 = arith.index_cast %47 : i32 to index
      %49 = memref.load %arg1[%48] : memref<32xi32, #tpu.memory_space<smem>>
      %c16_i32_23 = arith.constant 16 : i32
      %50 = arith.addi %c16_i32_23, %19 : i32
      %51 = arith.addi %50, %c2_i32_22 : i32
      %52 = arith.index_cast %51 : i32 to index
      %53 = memref.load %arg1[%52] : memref<32xi32, #tpu.memory_space<smem>>
      %54 = arith.index_cast %49 : i32 to index
      %c0_24 = arith.constant 0 : index
      %55 = vector.load %arg2[%54, %c0_24] : memref<32x32xf32, #tpu.memory_space<vmem>>, vector<1x32xf32>
      %56 = arith.index_cast %53 : i32 to index
      %c0_25 = arith.constant 0 : index
      %57 = vector.load %arg2[%56, %c0_25] : memref<32x32xf32, #tpu.memory_space<vmem>>, vector<1x32xf32>
      %58 = arith.maximumf %45, %55 : vector<1x32xf32>
      %59 = arith.maximumf %46, %57 : vector<1x32xf32>
      %c3_i32 = arith.constant 3 : i32
      %60 = arith.addi %19, %c3_i32 : i32
      %61 = arith.index_cast %60 : i32 to index
      %62 = memref.load %arg1[%61] : memref<32xi32, #tpu.memory_space<smem>>
      %c16_i32_26 = arith.constant 16 : i32
      %63 = arith.addi %c16_i32_26, %19 : i32
      %64 = arith.addi %63, %c3_i32 : i32
      %65 = arith.index_cast %64 : i32 to index
      %66 = memref.load %arg1[%65] : memref<32xi32, #tpu.memory_space<smem>>
      %67 = arith.index_cast %62 : i32 to index
      %c0_27 = arith.constant 0 : index
      %68 = vector.load %arg2[%67, %c0_27] : memref<32x32xf32, #tpu.memory_space<vmem>>, vector<1x32xf32>
      %69 = arith.index_cast %66 : i32 to index
      %c0_28 = arith.constant 0 : index
      %70 = vector.load %arg2[%69, %c0_28] : memref<32x32xf32, #tpu.memory_space<vmem>>, vector<1x32xf32>
      %71 = arith.maximumf %58, %68 : vector<1x32xf32>
      %72 = arith.maximumf %59, %70 : vector<1x32xf32>
      %c4_i32 = arith.constant 4 : i32
      %73 = arith.addi %19, %c4_i32 : i32
      %74 = arith.index_cast %73 : i32 to index
      %75 = memref.load %arg1[%74] : memref<32xi32, #tpu.memory_space<smem>>
      %c16_i32_29 = arith.constant 16 : i32
      %76 = arith.addi %c16_i32_29, %19 : i32
      %77 = arith.addi %76, %c4_i32 : i32
      %78 = arith.index_cast %77 : i32 to index
      %79 = memref.load %arg1[%78] : memref<32xi32, #tpu.memory_space<smem>>
      %80 = arith.index_cast %75 : i32 to index
      %c0_30 = arith.constant 0 : index
      %81 = vector.load %arg2[%80, %c0_30] : memref<32x32xf32, #tpu.memory_space<vmem>>, vector<1x32xf32>
      %82 = arith.index_cast %79 : i32 to index
      %c0_31 = arith.constant 0 : index
      %83 = vector.load %arg2[%82, %c0_31] : memref<32x32xf32, #tpu.memory_space<vmem>>, vector<1x32xf32>
      %84 = arith.maximumf %71, %81 : vector<1x32xf32>
      %85 = arith.maximumf %72, %83 : vector<1x32xf32>
      %c5_i32 = arith.constant 5 : i32
      %86 = arith.addi %19, %c5_i32 : i32
      %87 = arith.index_cast %86 : i32 to index
      %88 = memref.load %arg1[%87] : memref<32xi32, #tpu.memory_space<smem>>
      %c16_i32_32 = arith.constant 16 : i32
      %89 = arith.addi %c16_i32_32, %19 : i32
      %90 = arith.addi %89, %c5_i32 : i32
      %91 = arith.index_cast %90 : i32 to index
      %92 = memref.load %arg1[%91] : memref<32xi32, #tpu.memory_space<smem>>
      %93 = arith.index_cast %88 : i32 to index
      %c0_33 = arith.constant 0 : index
      %94 = vector.load %arg2[%93, %c0_33] : memref<32x32xf32, #tpu.memory_space<vmem>>, vector<1x32xf32>
      %95 = arith.index_cast %92 : i32 to index
      %c0_34 = arith.constant 0 : index
      %96 = vector.load %arg2[%95, %c0_34] : memref<32x32xf32, #tpu.memory_space<vmem>>, vector<1x32xf32>
      %97 = arith.maximumf %84, %94 : vector<1x32xf32>
      %98 = arith.maximumf %85, %96 : vector<1x32xf32>
      %c6_i32 = arith.constant 6 : i32
      %99 = arith.addi %19, %c6_i32 : i32
      %100 = arith.index_cast %99 : i32 to index
      %101 = memref.load %arg1[%100] : memref<32xi32, #tpu.memory_space<smem>>
      %c16_i32_35 = arith.constant 16 : i32
      %102 = arith.addi %c16_i32_35, %19 : i32
      %103 = arith.addi %102, %c6_i32 : i32
      %104 = arith.index_cast %103 : i32 to index
      %105 = memref.load %arg1[%104] : memref<32xi32, #tpu.memory_space<smem>>
      %106 = arith.index_cast %101 : i32 to index
      %c0_36 = arith.constant 0 : index
      %107 = vector.load %arg2[%106, %c0_36] : memref<32x32xf32, #tpu.memory_space<vmem>>, vector<1x32xf32>
      %108 = arith.index_cast %105 : i32 to index
      %c0_37 = arith.constant 0 : index
      %109 = vector.load %arg2[%108, %c0_37] : memref<32x32xf32, #tpu.memory_space<vmem>>, vector<1x32xf32>
      %110 = arith.maximumf %97, %107 : vector<1x32xf32>
      %111 = arith.maximumf %98, %109 : vector<1x32xf32>
      %c7_i32 = arith.constant 7 : i32
      %112 = arith.addi %19, %c7_i32 : i32
      %113 = arith.index_cast %112 : i32 to index
      %114 = memref.load %arg1[%113] : memref<32xi32, #tpu.memory_space<smem>>
      %c16_i32_38 = arith.constant 16 : i32
      %115 = arith.addi %c16_i32_38, %19 : i32
      %116 = arith.addi %115, %c7_i32 : i32
      %117 = arith.index_cast %116 : i32 to index
      %118 = memref.load %arg1[%117] : memref<32xi32, #tpu.memory_space<smem>>
      %119 = arith.index_cast %114 : i32 to index
      %c0_39 = arith.constant 0 : index
      %120 = vector.load %arg2[%119, %c0_39] : memref<32x32xf32, #tpu.memory_space<vmem>>, vector<1x32xf32>
      %121 = arith.index_cast %118 : i32 to index
      %c0_40 = arith.constant 0 : index
      %122 = vector.load %arg2[%121, %c0_40] : memref<32x32xf32, #tpu.memory_space<vmem>>, vector<1x32xf32>
      %123 = arith.maximumf %110, %120 : vector<1x32xf32>
      %124 = arith.maximumf %111, %122 : vector<1x32xf32>
      %c8_i32_41 = arith.constant 8 : i32
      %125 = arith.mulf %123, %1 : vector<1x32xf32>
      %126 = arith.mulf %124, %2 : vector<1x32xf32>
      %127 = arith.addf %125, %126 : vector<1x32xf32>
      %128 = arith.index_cast %17 : i32 to index
      %c0_42 = arith.constant 0 : index
      %129 = vector.load %arg6[%128, %c0_42] : memref<2x32xf32, #tpu.memory_space<vmem>>, vector<1x32xf32>
      tpu.vector_store %arg6[%128, %c0_42], %127 {strides = array<i32>} : memref<2x32xf32, #tpu.memory_space<vmem>>, vector<1x32xf32>,
    }
    %c2_i32_3 = arith.constant 2 : i32
    %c0_4 = arith.constant 0 : index
    %c0_5 = arith.constant 0 : index
    %4 = vector.load %arg6[%c0_4, %c0_5] : memref<2x32xf32, #tpu.memory_space<vmem>>, vector<2x32xf32>
    %cst = arith.constant dense<0.000000e+00> : vector<2xf32>
    %5 = vector.multi_reduction <add>, %4, %cst [1] : vector<2x32xf32> to vector<2xf32>
    %c0_6 = arith.constant 0 : index
    %c0_7 = arith.constant 0 : index
    %6 = memref.load %arg4[%c0_6, %c0_7] : memref<1x1xf32, #tpu.memory_space<smem>>
    %7 = vector.broadcast %6 : f32 to vector<2xf32>
    %8 = arith.addf %5, %7 : vector<2xf32>
    %9 = arith.negf %8 : vector<2xf32>
    %10 = math.exp %9 : vector<2xf32>
    %cst_8 = arith.constant 1.000000e+00 : f32
    %11 = vector.broadcast %cst_8 : f32 to vector<2xf32>
    %12 = arith.addf %11, %10 : vector<2xf32>
    %13 = arith.divf %11, %12 : vector<2xf32>
    %14 = vector.shape_cast %13 : vector<2xf32> to vector<1x1x2xf32>
    %c0_9 = arith.constant 0 : index
    %c0_10 = arith.constant 0 : index
    %c0_11 = arith.constant 0 : index
    %15 = vector.load %arg5[%c0_9, %c0_10, %c0_11] : memref<1x1x2xf32, #tpu.memory_space<vmem>>, vector<1x1x2xf32>
    tpu.vector_store %arg5[%c0_9, %c0_10, %c0_11], %14 {strides = array<i32>} : memref<1x1x2xf32, #tpu.memory_space<vmem>>, vector<1x1x2xf32>,
    return
  }
  func.func @transform_0(%arg0: i32, %arg1: memref<32xi32, #tpu.memory_space<smem>>) -> (i32, i32) {
    %c0_i32 = arith.constant 0 : i32
    %c0_i32_0 = arith.constant 0 : i32
    %c0_i32_1 = arith.constant 0 : i32
    return %c0_i32, %c0_i32_0 : i32, i32
  }
  func.func @transform_1(%arg0: i32, %arg1: memref<32xi32, #tpu.memory_space<smem>>) -> (i32, i32) {
    %c0_i32 = arith.constant 0 : i32
    %c0_i32_0 = arith.constant 0 : i32
    %c0_i32_1 = arith.constant 0 : i32
    return %c0_i32, %c0_i32_0 : i32, i32
  }
  func.func @transform_2(%arg0: i32, %arg1: memref<32xi32, #tpu.memory_space<smem>>) -> (i32, i32) {
    %c0_i32 = arith.constant 0 : i32
    %c0_i32_0 = arith.constant 0 : i32
    %c0_i32_1 = arith.constant 0 : i32
    return %c0_i32, %c0_i32_0 : i32, i32
  }
  func.func @transform_3(%arg0: i32, %arg1: memref<32xi32, #tpu.memory_space<smem>>) -> (i32, i32, i32) {
    %c0_i32 = arith.constant 0 : i32
    %c0_i32_0 = arith.constant 0 : i32
    %c0_i32_1 = arith.constant 0 : i32
    return %arg0, %c0_i32, %c0_i32_0 : i32, i32, i32
  }
}

</mosaic_0001>

<llo_original>
// kernel: tpu_custom_call.1
$region0: #{tpu_custom_call.1}
  #allocation0 [shape = 'u32[]', space=smem, size = 0x4, offset = 0x4, fixed_abs, tag = 'smem constant byte address 0x4 - core index']
  #allocation1 [shape = 'u32[144,128]{1,0:T(1,128)}', space=vmem, size = 0x12000, scoped, tag = 'internal scratch']
  #allocation2 [shape = 'f32[2,32]{1,0:T(2,128)}', space=vmem, size = 0x400, scoped, tag = 'scratch operand']
  #allocation3 [shape = 's32[1]{0}', space=sflag, size = 0x4, scoped, tag = 'scoped memory for tpu_custom_call.1']
  #allocation4 [shape = 'u8[512]{0}', space=smem, size = 0x200, scoped, tag = 'prefetched SMEM operand 0']
  #allocation5 [shape = 'f32[1,1]{1,0:T(1,128)S(6)}', space=smem, size = 0x200, scoped, tag = 'scoped memory for tpu_custom_call.1']
  %s0 = inlined_call_operand.vmem [shape: s32[32], index: 0, kind: input, shape index: {}]
  %s1 = inlined_call_operand.hbm [shape: f32[32,32], index: 1, kind: input, shape index: {}]
  %s2 = inlined_call_operand.vmem [shape: f32[2,32], index: 2, kind: input, shape index: {}]
  %s3 = inlined_call_operand.<no memory space> [shape: f32[1,1], index: 3, kind: input, shape index: {}]
  %s4 = inlined_call_operand.hbm [shape: f32[1,1,2], index: 4, kind: output, shape index: {}]
  %s5 = sld [smem:[#allocation0]]
  $region33: #{tpu_custom_call.1} parent=0
    _
  %s7 = ssub.s32 1, %s5
  %s8 = scalar_select 0, %s7, %s5
  %s9 = sshll.u32 %s0, 4
  %s10 = int_to_ptr.vmem [resolvable:$true] %s9
  %12 = dma.vmem_to_smem %s10, 16, [#allocation4], [#allocation3]
  %13 = sst [smem:[#allocation5]] %s3
  %14 = dma.done [#allocation3], 16
  %15 = sfence
  $region1: #{tpu_custom_call.1} parent=0
    #allocation6 [shape = 'u8[16384]{0}', space=vmem, size = 0x4000, scoped, tag = 'input window, operand 1, single buffered']
    #allocation7 [shape = 's32[1]{0}', space=sflag, size = 0x4, scoped, tag = 'scoped memory for tpu_custom_call.1']
    #allocation8 [shape = 's32[1]{0}', space=sflag, size = 0x4, scoped, tag = 'scoped memory for tpu_custom_call.1']
    #allocation9 [shape = 'u8[512]{0}', space=vmem, size = 0x400, scoped, tag = 'output window, operand 0, single buffered']
    %16 = vsyncpa [#allocation7], 0
    %17 = vsyncpa [#allocation8], 0
    // Predicated region
    $region2: #{tpu_custom_call.1} parent=1 // pred_check
      _
    $region3: #{tpu_custom_call.1} parent=1 // pred_check_branch
      %19 = sbr.rel (0) target = $region5
    $region4: #{tpu_custom_call.1} parent=1 // pred_region
      %s21 = ssub.s32 512, 512
      %22 = vsyncadd [#allocation7], %s21
      %s23 = sshll.u32 [#allocation6], 4
      %s24 = int_to_ptr.vmem [resolvable:$true] %s23
      %29 = dma.hbm_to_vmem [thread:$0]  %s1, 512, %s24, [#allocation7], 128, 128, 8
    $region5: #{tpu_custom_call.1} parent=1 // pred_fallthru
      _
    // Predicated region
    $region6: #{tpu_custom_call.1} parent=1 // pred_check
      _
    $region7: #{tpu_custom_call.1} parent=1 // pred_check_branch
      %31 = sbr.rel (0) target = $region9
    $region8: #{tpu_custom_call.1} parent=1 // pred_region
      _
    $region9: #{tpu_custom_call.1} parent=1 // pred_fallthru
      _
    // Predicated region
    $region10: #{tpu_custom_call.1} parent=1 // pred_check
      _
    $region11: #{tpu_custom_call.1} parent=1 // pred_check_branch
      %33 = sbr.rel (0) target = $region13
    $region12: #{tpu_custom_call.1} parent=1 // pred_region
      _
    $region13: #{tpu_custom_call.1} parent=1 // pred_fallthru
      _
    // Predicated region
    $region14: #{tpu_custom_call.1} parent=1 // pred_check
      _
    $region15: #{tpu_custom_call.1} parent=1 // pred_check_branch
      %35 = sbr.rel (0) target = $region17
    $region16: #{tpu_custom_call.1} parent=1 // pred_region
      %36 = dma.done [#allocation7], 512
    $region17: #{tpu_custom_call.1} parent=1 // pred_fallthru
      _
    %s37 = smul.u32 0, 2
    %v38 = vld [vmem:[%s2] sm:$0x1]
    %v39 = vld [vmem:[%s2 + $0x1] sm:$0x1]
    loop: start=0, step=1, limit=2
    $region18: #{tpu_custom_call.1} parent=1 // loop_pre_header
      _
    $region19: #{tpu_custom_call.1} parent=1 // loop_header
      %s41 = sphi 0, %s45
      %p42 = scmp.ge.s32.totalorder %s41, 2
    $region20: #{tpu_custom_call.1} parent=1 // loop_header_branch
      %44 = sbr.rel (%p42) target = $region24
    $region21: #{tpu_custom_call.1} parent=1 // loop_body
      %s46 = sadd.s32 %s37, %s41
      %s47 = smul.u32 %s46, 8
      %s48 = sld [smem:[#allocation4 + %s47]]
      %s49 = sadd.s32 %s47, 16
      %s50 = sld [smem:[#allocation4 + %s49]]
      %s51 = scalar_lea.vmem [#allocation6], %s48
      %v52 = vld [vmem:[%s51] sm:$0x1]
      %s53 = scalar_lea.vmem [#allocation6], %s50
      %v54 = vld [vmem:[%s53] sm:$0x1]
      %s55 = sadd.s32 %s47, 1
      %s56 = sld [smem:[#allocation4 + %s55]]
      %s57 = sadd.s32 %s47, 17
      %s58 = sld [smem:[#allocation4 + %s57]]
      %s59 = scalar_lea.vmem [#allocation6], %s56
      %v60 = vld [vmem:[%s59] sm:$0x1]
      %s61 = scalar_lea.vmem [#allocation6], %s58
      %v62 = vld [vmem:[%s61] sm:$0x1]
      %v63 = vmax.f32 %v52, %v60
      %v64 = vmax.f32 %v54, %v62
      %s65 = sadd.s32 %s47, 2
      %s66 = sld [smem:[#allocation4 + %s65]]
      %s67 = sadd.s32 %s47, 18
      %s68 = sld [smem:[#allocation4 + %s67]]
      %s69 = scalar_lea.vmem [#allocation6], %s66
      %v70 = vld [vmem:[%s69] sm:$0x1]
      %s71 = scalar_lea.vmem [#allocation6], %s68
      %v72 = vld [vmem:[%s71] sm:$0x1]
      %v73 = vmax.f32 %v63, %v70
      %v74 = vmax.f32 %v64, %v72
      %s75 = sadd.s32 %s47, 3
      %s76 = sld [smem:[#allocation4 + %s75]]
      %s77 = sadd.s32 %s47, 19
      %s78 = sld [smem:[#allocation4 + %s77]]
      %s79 = scalar_lea.vmem [#allocation6], %s76
      %v80 = vld [vmem:[%s79] sm:$0x1]
      %s81 = scalar_lea.vmem [#allocation6], %s78
      %v82 = vld [vmem:[%s81] sm:$0x1]
      %v83 = vmax.f32 %v73, %v80
      %v84 = vmax.f32 %v74, %v82
      %s85 = sadd.s32 %s47, 4
      %s86 = sld [smem:[#allocation4 + %s85]]
      %s87 = sadd.s32 %s47, 20
      %s88 = sld [smem:[#allocation4 + %s87]]
      %s89 = scalar_lea.vmem [#allocation6], %s86
      %v90 = vld [vmem:[%s89] sm:$0x1]
      %s91 = scalar_lea.vmem [#allocation6], %s88
      %v92 = vld [vmem:[%s91] sm:$0x1]
      %v93 = vmax.f32 %v83, %v90
      %v94 = vmax.f32 %v84, %v92
      %s95 = sadd.s32 %s47, 5
      %s96 = sld [smem:[#allocation4 + %s95]]
      %s97 = sadd.s32 %s47, 21
      %s98 = sld [smem:[#allocation4 + %s97]]
      %s99 = scalar_lea.vmem [#allocation6], %s96
      %v100 = vld [vmem:[%s99] sm:$0x1]
      %s101 = scalar_lea.vmem [#allocation6], %s98
      %v102 = vld [vmem:[%s101] sm:$0x1]
      %v103 = vmax.f32 %v93, %v100
      %v104 = vmax.f32 %v94, %v102
      %s105 = sadd.s32 %s47, 6
      %s106 = sld [smem:[#allocation4 + %s105]]
      %s107 = sadd.s32 %s47, 22
      %s108 = sld [smem:[#allocation4 + %s107]]
      %s109 = scalar_lea.vmem [#allocation6], %s106
      %v110 = vld [vmem:[%s109] sm:$0x1]
      %s111 = scalar_lea.vmem [#allocation6], %s108
      %v112 = vld [vmem:[%s111] sm:$0x1]
      %v113 = vmax.f32 %v103, %v110
      %v114 = vmax.f32 %v104, %v112
      %s115 = sadd.s32 %s47, 7
      %s116 = sld [smem:[#allocation4 + %s115]]
      %s117 = sadd.s32 %s47, 23
      %s118 = sld [smem:[#allocation4 + %s117]]
      %s119 = scalar_lea.vmem [#allocation6], %s116
      %v120 = vld [vmem:[%s119] sm:$0x1]
      %s121 = scalar_lea.vmem [#allocation6], %s118
      %v122 = vld [vmem:[%s121] sm:$0x1]
      %v123 = vmax.f32 %v113, %v120
      %v124 = vmax.f32 %v114, %v122
      %v125 = vmul.f32 %v123, %v38
      %v126 = vmul.f32 %v124, %v39
      %v127 = vadd.f32 %v125, %v126
      %s128 = scalar_lea.vmem [#allocation2], %s41
      %vm129 = vcmask 253952
      %130 = vst.msk [vmem:[%s128] sm:$0x1] %vm129, %v127
    $region22: #{tpu_custom_call.1} parent=1 // loop_footer
      %s45 = sadd.s32 1, %s41
    $region23: #{tpu_custom_call.1} parent=1 // loop_footer_branch
      %40 = sbr.rel target = $region19
    $region24: #{tpu_custom_call.1} parent=1 // loop_exit
      _
    %v131 = vld [vmem:[#allocation2] sm:$0x3]
    %vm132 = vcmask 254976
    %v133 = vsel %vm132, %v131, 0.0
    %134 = vadd.xlane.f32.xlu0 %v133
    %v135 = vpop.xlane.xlu0 %134
    %s136 = sld [smem:[#allocation5]]
    %v137 = vstv %s136
    %v138 = vadd.f32 %v135, %v137
    %v139 = vxor.u32 %v138, 2147483648
    %v140 = vmul.f32 %v139, 1.442695
    %v141 = vpow.pop %v140
    %v142 = vadd.f32 %v141, 1.0
    %v143 = vrcp.pop %v142
    %v144 = vmul.f32 1.0, %v143
    %v146 = vlaneseq
    %v147 = vand.u32 %v146, 127
    %v148 = vlaneseq
    %v149 = vshrl.u32 %v148, 7
    %v150 = vsub.s32 %v147, %v149
    %v151 = vrot.slane %v144, %v150
    %vm153 = vcmask 8192
    %154 = vst.msk [vmem:[#allocation9] sm:$0x1] %vm153, %v151
    // Predicated region
    $region25: #{tpu_custom_call.1} parent=1 // pred_check
      _
    $region26: #{tpu_custom_call.1} parent=1 // pred_check_branch
      %156 = sbr.rel (0) target = $region28
    $region27: #{tpu_custom_call.1} parent=1 // pred_region
      %s158 = ssub.s32 16, 16
      %159 = vsyncadd [#allocation8], %s158
      %s161 = sshll.u32 [#allocation9], 4
      %s162 = int_to_ptr.vmem [resolvable:$true] %s161
      %164 = dma.vmem_to_hbm [thread:$0]  %s162, 16, %s4, [#allocation8]
    $region28: #{tpu_custom_call.1} parent=1 // pred_fallthru
      _
    // Predicated region
    $region29: #{tpu_custom_call.1} parent=1 // pred_check
      _
    $region30: #{tpu_custom_call.1} parent=1 // pred_check_branch
      %166 = sbr.rel (0) target = $region32
    $region31: #{tpu_custom_call.1} parent=1 // pred_region
      %167 = dma.done [#allocation8], 16
    $region32: #{tpu_custom_call.1} parent=1 // pred_fallthru
      _
    %168 = vsyncpa [#allocation7], 1
    %169 = vsyncpa [#allocation8], 1

</llo_original>
